<compile_context>
chip_gen: v7x
topology: tpu7x:2x2x1
jax: 0.10.0
libtpu: 0.0.40
codegen_flags: <defaults>
</compile_context>

<pallas_src>
import functools

import jax
import jax.numpy as jnp
from jax import lax
from jax.experimental import pallas as pl
from jax.experimental.pallas import tpu as pltpu

_EPS = 1e-5
_VMEM_LIMIT = 48 * 1024 * 1024     # conservative for v7x (64 MiB physical)
_TM_TARGET = 1024                  # output positions per tile (lane dim)


def _pick_tm(m, target=_TM_TARGET):
    """Largest multiple-of-128 divisor of m that is <= target (else full m)."""
    if m % 128 != 0 or m <= 128:
        return m                   # full-extent block is always layout-legal
    for cand in range(min(target, m), 127, -128):
        if m % cand == 0:
            return cand
    return 128


def _stats_kernel(x_ref, w_ref, st_ref):
    """Pass 1: fused conv; per-(image, block) per-channel sum / sum-of-squares."""
    # x_ref: (1, 9*Cin, TM) bf16 ; w_ref: (2*Cout, 9*Cin) bf16
    y = jnp.dot(w_ref[...], x_ref[0], preferred_element_type=jnp.float32)
    s = jnp.sum(y, axis=1, keepdims=True)              # (2*Cout, 1)
    q = jnp.sum(y * y, axis=1, keepdims=True)          # (2*Cout, 1)
    st_ref[0, 0] = jnp.concatenate([s, q], axis=1)     # (2*Cout, 2)


def _norm_kernel(x_ref, w_ref, ss_ref, o_ref, *, cout):
    """Pass 2: recompute conv, apply folded BN, add branches, lane-dense store."""
    y = jnp.dot(w_ref[...], x_ref[0], preferred_element_type=jnp.float32)
    yn = y * ss_ref[:, 0:1] + ss_ref[:, 1:2]           # per-channel scale/shift
    # Rows [0:cout] = 3x3 branch, [cout:2*cout] = 1x1 branch.
    o_ref[0] = (yn[0:cout, :] + yn[cout:, :]).astype(o_ref.dtype)


@jax.jit
def encoder_ss_forward(x_nchw, w3, w1, g3, b3, g1, b1):
    """x_nchw: (N, Cin, H, W); w3: (Cout, Cin, 3, 3); w1: (Cout, Cin, 1, 1)."""
    n, cin, h, w = x_nchw.shape
    cout = w3.shape[0]
    c2 = 2 * cout
    ho = (h - 1) // 2 + 1
    wo = (w - 1) // 2 + 1
    m = ho * wo
    k9 = 9 * cin

    # ---- glue (plain JAX; NCHW slices only, no transpose) -------------------
    hp, wp = 2 * ho + 1, 2 * wo + 1
    xp = jnp.pad(x_nchw.astype(jnp.float32),
                 ((0, 0), (0, 0), (1, hp - h - 1), (1, wp - w - 1)))
    taps = []
    for kh in range(3):
        for kw in range(3):
            v = xp[:, :, kh:kh + 2 * ho - 1:2, kw:kw + 2 * wo - 1:2]  # (n,cin,ho,wo)
            taps.append(v.reshape(n, cin, m))
    # Channel-major tap-stacked view; spatial (lane) axis is dense & unshifted.
    x_view = jnp.concatenate(taps, axis=1).astype(jnp.bfloat16)       # (n, 9*cin, m)

    # Fused weight rows: [0:Cout] = 3x3 branch, [Cout:2*Cout] = 1x1 branch
    # (1x1 lives on the centre tap t=4).  Column order is tap-major then Cin,
    # matching the x_view concat; gamma/beta concat below MUST stay in the
    # same [3x3 | 1x1] row order.
    w3_r = jnp.transpose(w3.astype(jnp.float32), (0, 2, 3, 1)).reshape(cout, k9)
    w1_r = jnp.zeros((cout, k9), jnp.float32).at[:, 4 * cin:5 * cin].set(
        w1.reshape(cout, cin).astype(jnp.float32))
    w_fused = jnp.concatenate([w3_r, w1_r], axis=0).astype(jnp.bfloat16)  # (c2,k9)

    tm = _pick_tm(m)
    nblk = m // tm
    grid = (n, nblk)

    x_spec = pl.BlockSpec((1, k9, tm), lambda i, b: (i, 0, b))
    w_spec = pl.BlockSpec((c2, k9), lambda i, b: (0, 0))
    cparams = pltpu.CompilerParams(
        dimension_semantics=("parallel", "parallel"),
        vmem_limit_bytes=_VMEM_LIMIT)

    conv_flops = 2 * n * m * k9 * c2
    view_bytes = n * k9 * m * 2 + c2 * k9 * 2

    # ---- pass 1: conv + per-(image, block) per-channel sum / sum-of-squares -
    stats = pl.pallas_call(
        _stats_kernel,
        out_shape=jax.ShapeDtypeStruct((n, nblk, c2, 2), jnp.float32),
        grid_spec=pltpu.PrefetchScalarGridSpec(
            num_scalar_prefetch=0,
            grid=grid,
            in_specs=[x_spec, w_spec],
            out_specs=pl.BlockSpec((1, 1, c2, 2), lambda i, b: (i, b, 0, 0))),
        compiler_params=cparams,
        cost_estimate=pl.CostEstimate(
            flops=conv_flops, transcendentals=0,
            bytes_accessed=view_bytes + n * nblk * c2 * 2 * 4),
    )(x_view, w_fused)

    # ---- fold full-batch BN statistics into per-channel scale / shift -------
    m_total = float(n * m)
    s = jnp.sum(stats[..., 0], axis=(0, 1))
    q = jnp.sum(stats[..., 1], axis=(0, 1))
    mean = s / m_total
    var = jnp.maximum(q / m_total - mean * mean, 0.0)   # clamp vs. cancellation
    gamma = jnp.concatenate([g3, g1]).astype(jnp.float32)   # [3x3 | 1x1] order
    beta = jnp.concatenate([b3, b1]).astype(jnp.float32)
    scale = gamma * lax.rsqrt(var + _EPS)
    shift = beta - mean * scale
    ss = jnp.stack([scale, shift], axis=1)                  # (2*Cout, 2) f32

    # ---- pass 2: recompute conv, normalize, add branches, lane-dense store --
    # (Output kept f32 to match the PyTorch module; bf16 would halve writeback.)
    out = pl.pallas_call(
        functools.partial(_norm_kernel, cout=cout),
        out_shape=jax.ShapeDtypeStruct((n, cout, m), jnp.float32),
        grid_spec=pltpu.PrefetchScalarGridSpec(
            num_scalar_prefetch=0,
            grid=grid,
            in_specs=[x_spec, w_spec,
                      pl.BlockSpec((c2, 2), lambda i, b: (0, 0))],
            out_specs=pl.BlockSpec((1, cout, tm), lambda i, b: (i, 0, b))),
        compiler_params=cparams,
        cost_estimate=pl.CostEstimate(
            flops=conv_flops, transcendentals=0,
            bytes_accessed=view_bytes + c2 * 2 * 4 + n * cout * m * 4),
    )(x_view, w_fused, ss)

    # (N, Cout, Ho*Wo) -> NCHW is a free reshape (no output transpose).
    return out.reshape(n, cout, ho, wo)


def _reference(x_nchw, w3, w1, g3, b3, g1, b1):
    """Pure-JAX f32 reference (conv + training-mode BN) for sanity checking."""
    def bn(y):  # y: (N, C, H, W)
        mu = jnp.mean(y, axis=(0, 2, 3), keepdims=True)
        var = jnp.mean((y - mu) ** 2, axis=(0, 2, 3), keepdims=True)
        return (y - mu) * lax.rsqrt(var + _EPS)

    y3 = lax.conv_general_dilated(
        x_nchw, w3, window_strides=(2, 2), padding=((1, 1), (1, 1)),
        dimension_numbers=("NCHW", "OIHW", "NCHW"))
    y1 = lax.conv_general_dilated(
        x_nchw, w1, window_strides=(2, 2), padding=((0, 0), (0, 0)),
        dimension_numbers=("NCHW", "OIHW", "NCHW"))
    cout = w3.shape[0]
    y3 = bn(y3) * g3.reshape(1, cout, 1, 1) + b3.reshape(1, cout, 1, 1)
    y1 = bn(y1) * g1.reshape(1, cout, 1, 1) + b1.reshape(1, cout, 1, 1)
    return y3 + y1


if __name__ == "__main__":
    # NOTE: tiny harness for correctness only; tune TM / vmem_limit at
    # production shapes (every dim here is below the (8,128) granule).
    key = jax.random.PRNGKey(0)
    k_x, k_w3, k_w1 = jax.random.split(key, 3)

    N, CIN, COUT, H, W = 2, 4, 8, 16, 16

    x = jax.random.normal(k_x, (N, CIN, H, W), dtype=jnp.float32)
    w3 = jax.random.normal(k_w3, (COUT, CIN, 3, 3), dtype=jnp.float32) * 0.1
    w1 = jax.random.normal(k_w1, (COUT, CIN, 1, 1), dtype=jnp.float32) * 0.1
    g3 = jnp.ones((COUT,), jnp.float32)     # BatchNorm default init
    b3 = jnp.zeros((COUT,), jnp.float32)
    g1 = jnp.ones((COUT,), jnp.float32)
    b1 = jnp.zeros((COUT,), jnp.float32)

    out = encoder_ss_forward(x, w3, w1, g3, b3, g1, b1)
    out = jax.block_until_ready(out)

    ref = _reference(x, w3, w1, g3, b3, g1, b1)
    assert out.shape == (N, COUT, H // 2, W // 2), out.shape
    # bf16 MXU operands -> loosened tolerance vs. the f32 reference.
    assert jnp.allclose(out, ref, atol=5e-2, rtol=5e-2), float(
        jnp.max(jnp.abs(out - ref)))

    print("KERNEL_OK")
</pallas_src>

<mosaic_0001>
module attributes {stable_mosaic.version = 11 : i64} {
  func.func @_stats_kernel(%arg0: i32, %arg1: i32, %arg2: memref<1x36x64xbf16, #tpu.memory_space<vmem>>, %arg3: memref<16x36xbf16, #tpu.memory_space<vmem>>, %arg4: memref<1x1x16x2xf32, #tpu.memory_space<vmem>>) attributes {dimension_semantics = [#tpu.dimension_semantics<parallel>, #tpu.dimension_semantics<parallel>], iteration_bounds = array<i64: 2, 1>, scalar_prefetch = 0 : i64, scratch_operands = 0 : i64, tpu.core_type = #tpu.core_type<tc>, window_params = [{transform_indices = @transform_0, window_bounds = array<i64: 1, 36, 64>}, {pipeline_mode = #tpu.pipeline_mode<synchronous>, transform_indices = @transform_1, window_bounds = array<i64: 16, 36>}, {transform_indices = @transform_2, window_bounds = array<i64: 1, 1, 16, 2>}]} {
    %c0 = arith.constant 0 : index
    %c0_0 = arith.constant 0 : index
    %0 = vector.load %arg3[%c0, %c0_0] : memref<16x36xbf16, #tpu.memory_space<vmem>>, vector<16x36xbf16>
    %c0_1 = arith.constant 0 : index
    %c0_2 = arith.constant 0 : index
    %c0_3 = arith.constant 0 : index
    %1 = vector.load %arg2[%c0_1, %c0_2, %c0_3] : memref<1x36x64xbf16, #tpu.memory_space<vmem>>, vector<1x36x64xbf16>
    %2 = vector.shape_cast %1 : vector<1x36x64xbf16> to vector<36x64xbf16>
    %cst = arith.constant dense<0.000000e+00> : vector<16x64xf32>
    %3 = tpu.matmul %0, %2, %cst {dimension_numbers = #tpu.dot_dimension_numbers<[1], [0], [0], [1], [0, 0, 1, 1], [], []>} : vector<16x36xbf16>, vector<36x64xbf16>, vector<16x64xf32> -> vector<16x64xf32>
    %cst_4 = arith.constant dense<0.000000e+00> : vector<16xf32>
    %4 = vector.multi_reduction <add>, %3, %cst_4 [1] : vector<16x64xf32> to vector<16xf32>
    %5 = vector.shape_cast %4 : vector<16xf32> to vector<16x1xf32>
    %6 = arith.mulf %3, %3 : vector<16x64xf32>
    %cst_5 = arith.constant dense<0.000000e+00> : vector<16xf32>
    %7 = vector.multi_reduction <add>, %6, %cst_5 [1] : vector<16x64xf32> to vector<16xf32>
    %8 = vector.shape_cast %7 : vector<16xf32> to vector<16x1xf32>
    %9 = tpu.concatenate %5, %8 in 1 : vector<16x1xf32>, vector<16x1xf32> -> vector<16x2xf32>
    %c0_6 = arith.constant 0 : index
    %c0_7 = arith.constant 0 : index
    %c0_8 = arith.constant 0 : index
    %c0_9 = arith.constant 0 : index
    %10 = vector.load %arg4[%c0_6, %c0_7, %c0_8, %c0_9] : memref<1x1x16x2xf32, #tpu.memory_space<vmem>>, vector<1x1x16x2xf32>
    %11 = vector.shape_cast %10 : vector<1x1x16x2xf32> to vector<16x2xf32>
    %12 = vector.shape_cast %9 : vector<16x2xf32> to vector<1x1x16x2xf32>
    tpu.vector_store %arg4[%c0_6, %c0_7, %c0_8, %c0_9], %12 {strides = array<i32>} : memref<1x1x16x2xf32, #tpu.memory_space<vmem>>, vector<1x1x16x2xf32>,
    return
  }
  func.func @transform_0(%arg0: i32, %arg1: i32) -> (i32, i32, i32) {
    %c0_i32 = arith.constant 0 : i32
    %c0_i32_0 = arith.constant 0 : i32
    return %arg0, %c0_i32, %arg1 : i32, i32, i32
  }
  func.func @transform_1(%arg0: i32, %arg1: i32) -> (i32, i32) {
    %c0_i32 = arith.constant 0 : i32
    %c0_i32_0 = arith.constant 0 : i32
    %c0_i32_1 = arith.constant 0 : i32
    return %c0_i32, %c0_i32_0 : i32, i32
  }
  func.func @transform_2(%arg0: i32, %arg1: i32) -> (i32, i32, i32, i32) {
    %c0_i32 = arith.constant 0 : i32
    %c0_i32_0 = arith.constant 0 : i32
    %c0_i32_1 = arith.constant 0 : i32
    return %arg0, %arg1, %c0_i32, %c0_i32_0 : i32, i32, i32, i32
  }
}

module attributes {stable_mosaic.version = 11 : i64} {
  func.func @_norm_kernel(%arg0: i32, %arg1: i32, %arg2: memref<1x36x64xbf16, #tpu.memory_space<vmem>>, %arg3: memref<16x36xbf16, #tpu.memory_space<vmem>>, %arg4: memref<16x2xf32, #tpu.memory_space<vmem>>, %arg5: memref<1x8x64xf32, #tpu.memory_space<vmem>>) attributes {dimension_semantics = [#tpu.dimension_semantics<parallel>, #tpu.dimension_semantics<parallel>], iteration_bounds = array<i64: 2, 1>, scalar_prefetch = 0 : i64, scratch_operands = 0 : i64, tpu.core_type = #tpu.core_type<tc>, window_params = [{transform_indices = @transform_0, window_bounds = array<i64: 1, 36, 64>}, {pipeline_mode = #tpu.pipeline_mode<synchronous>, transform_indices = @transform_1, window_bounds = array<i64: 16, 36>}, {pipeline_mode = #tpu.pipeline_mode<synchronous>, transform_indices = @transform_2, window_bounds = array<i64: 16, 2>}, {transform_indices = @transform_3, window_bounds = array<i64: 1, 8, 64>}]} {
    %c0 = arith.constant 0 : index
    %c0_0 = arith.constant 0 : index
    %0 = vector.load %arg3[%c0, %c0_0] : memref<16x36xbf16, #tpu.memory_space<vmem>>, vector<16x36xbf16>
    %c0_1 = arith.constant 0 : index
    %c0_2 = arith.constant 0 : index
    %c0_3 = arith.constant 0 : index
    %1 = vector.load %arg2[%c0_1, %c0_2, %c0_3] : memref<1x36x64xbf16, #tpu.memory_space<vmem>>, vector<1x36x64xbf16>
    %2 = vector.shape_cast %1 : vector<1x36x64xbf16> to vector<36x64xbf16>
    %cst = arith.constant dense<0.000000e+00> : vector<16x64xf32>
    %3 = tpu.matmul %0, %2, %cst {dimension_numbers = #tpu.dot_dimension_numbers<[1], [0], [0], [1], [0, 0, 1, 1], [], []>} : vector<16x36xbf16>, vector<36x64xbf16>, vector<16x64xf32> -> vector<16x64xf32>
    %c0_4 = arith.constant 0 : index
    %c0_5 = arith.constant 0 : index
    %4 = vector.load %arg4[%c0_4, %c0_5] : memref<16x2xf32, #tpu.memory_space<vmem>>, vector<16x1xf32>
    %5 = vector.broadcast %4 : vector<16x1xf32> to vector<16x64xf32>
    %6 = arith.mulf %3, %5 : vector<16x64xf32>
    %c0_6 = arith.constant 0 : index
    %c1 = arith.constant 1 : index
    %7 = vector.load %arg4[%c0_6, %c1] : memref<16x2xf32, #tpu.memory_space<vmem>>, vector<16x1xf32>
    %8 = vector.broadcast %7 : vector<16x1xf32> to vector<16x64xf32>
    %9 = arith.addf %6, %8 : vector<16x64xf32>
    %10 = vector.extract_strided_slice %9 {offsets = [0, 0], sizes = [8, 64], strides = [1, 1]} : vector<16x64xf32> to vector<8x64xf32>
    %11 = vector.extract_strided_slice %9 {offsets = [8, 0], sizes = [8, 64], strides = [1, 1]} : vector<16x64xf32> to vector<8x64xf32>
    %12 = arith.addf %10, %11 : vector<8x64xf32>
    %c0_7 = arith.constant 0 : index
    %c0_8 = arith.constant 0 : index
    %c0_9 = arith.constant 0 : index
    %13 = vector.load %arg5[%c0_7, %c0_8, %c0_9] : memref<1x8x64xf32, #tpu.memory_space<vmem>>, vector<1x8x64xf32>
    %14 = vector.shape_cast %13 : vector<1x8x64xf32> to vector<8x64xf32>
    %15 = vector.shape_cast %12 : vector<8x64xf32> to vector<1x8x64xf32>
    tpu.vector_store %arg5[%c0_7, %c0_8, %c0_9], %15 {strides = array<i32>} : memref<1x8x64xf32, #tpu.memory_space<vmem>>, vector<1x8x64xf32>,
    return
  }
  func.func @transform_0(%arg0: i32, %arg1: i32) -> (i32, i32, i32) {
    %c0_i32 = arith.constant 0 : i32
    %c0_i32_0 = arith.constant 0 : i32
    return %arg0, %c0_i32, %arg1 : i32, i32, i32
  }
  func.func @transform_1(%arg0: i32, %arg1: i32) -> (i32, i32) {
    %c0_i32 = arith.constant 0 : i32
    %c0_i32_0 = arith.constant 0 : i32
    %c0_i32_1 = arith.constant 0 : i32
    return %c0_i32, %c0_i32_0 : i32, i32
  }
  func.func @transform_2(%arg0: i32, %arg1: i32) -> (i32, i32) {
    %c0_i32 = arith.constant 0 : i32
    %c0_i32_0 = arith.constant 0 : i32
    %c0_i32_1 = arith.constant 0 : i32
    return %c0_i32, %c0_i32_0 : i32, i32
  }
  func.func @transform_3(%arg0: i32, %arg1: i32) -> (i32, i32, i32) {
    %c0_i32 = arith.constant 0 : i32
    %c0_i32_0 = arith.constant 0 : i32
    return %arg0, %c0_i32, %arg1 : i32, i32, i32
  }
}

</mosaic_0001>

<llo_original>
// kernel: encoder_ss_forward.3
$region0: #{encoder_ss_forward.3}
  #allocation0 [shape = 'u32[]', space=smem, size = 0x4, offset = 0x4, fixed_abs, tag = 'smem constant byte address 0x4 - core index']
  #allocation1 [shape = 'u32[144,128]{1,0:T(1,128)}', space=vmem, size = 0x12000, scoped, tag = 'internal scratch']
  %s0 = inlined_call_operand.vmem [shape: bf16[2,36,64], index: 0, kind: input, shape index: {}]
  %s1 = inlined_call_operand.vmem [shape: bf16[16,36], index: 1, kind: input, shape index: {}]
  %s2 = inlined_call_operand.vmem [shape: f32[16,2], index: 2, kind: input, shape index: {}]
  %s3 = inlined_call_operand.vmem [shape: f32[2,8,64], index: 3, kind: output, shape index: {}]
  %s4 = sld [smem:[#allocation0]]
  $region45: #{encoder_ss_forward.3} parent=0
    _
  %s6 = ssub.s32 1, %s4
  %s7 = scalar_select 0, %s6, %s4
  loop: start=0, step=1, limit=4
  $region2: #{encoder_ss_forward.3} parent=0 // loop_pre_header
    _
  $region3: #{encoder_ss_forward.3} parent=0 // loop_header
    %s9 = sphi 0, %s13
    %p10 = scmp.ge.s32.totalorder %s9, 4
    %s16 = sphi 0, %s28
    %s17 = sphi 0, %s24
    %s18 = sphi 0, %s16
    %s19 = sphi 0, %s17
    %s20 = sphi 0, %s18
    %s21 = sphi 0, %s19
    %s33 = sphi 0, %s35
    %s36 = sphi 0, %s33
    %s37 = sphi 0, %s36
    %s53 = sphi 0, %s37
    %s57 = sphi 0, %s57
    %s59 = sphi 0, %s57
    %s60 = sphi 0, %s59
    %s74 = sphi 0, %s60
    %s78 = sphi 0, %s78
    %s80 = sphi 0, %s78
    %s81 = sphi 0, %s80
    %s95 = sphi 0, %s81
    %s103 = sphi 0, %s105
    %s106 = sphi 0, %s103
    %s107 = sphi 0, %s106
    %s123 = sphi 0, %s107
  $region4: #{encoder_ss_forward.3} parent=0 // loop_header_branch
    %12 = sbr.rel (%p10) target = $region8
  $region5: #{encoder_ss_forward.3} parent=0 // loop_body
    %s14 = ssub.s32 %s9, 1
    %s15 = ssub.s32 %s9, 2
    %s22 = sadd.s32 1, %s17
    %p23 = scmp.ge.s32.totalorder %s22, 1
    %s24 = scalar_select %p23, 0, %s22
    %s25 = sadd.s32 1, %s16
    %s26 = scalar_select %p23, %s25, %s16
    %p27 = scmp.ge.s32.totalorder %s26, 2
    %s28 = scalar_select %p27, 0, %s26
    %s29 = ssub.s32 %s16, %s28
    %s30 = ssub.s32 %s17, %s24
    %s31 = sor.u32 %s29, %s30
    %p32 = scmp.eq.s32.totalorder %s31, 0
    %s34 = sadd.s32 %s33, 1
    %s35 = scalar_select %p32, %s33, %s34
    %p38 = pneg %p32
    %p39 = scmp.eq.s32.totalorder %s9, 1
    %p40 = por %p38, %p39
    %p41 = scmp.ne.s32.totalorder %s33, %s36
    %p42 = scmp.eq.s32.totalorder %s9, 0
    %p43 = por %p41, %p42
    %p44 = scmp.ne.s32.totalorder %s33, %s36
    %p45 = scmp.eq.s32.totalorder %s14, 1
    %p46 = por %p44, %p45
    %p47 = scmp.ne.s32.totalorder %s36, %s37
    %p48 = scmp.eq.s32.totalorder %s14, 0
    %p49 = por %p47, %p48
    %p50 = scmp.ne.s32.totalorder %s36, %s37
    %p51 = scmp.eq.s32.totalorder %s15, 1
    %p52 = por %p50, %p51
    %p54 = scmp.ne.s32.totalorder %s37, %s53
    %p55 = scmp.eq.s32.totalorder %s15, 0
    %p56 = por %p54, %p55
    %s58 = sadd.s32 %s57, 1
    %p61 = scmp.eq.s32.totalorder %s9, 1
    %p62 = scmp.ne.s32.totalorder %s57, %s59
    %p63 = scmp.eq.s32.totalorder %s9, 0
    %p64 = por %p62, %p63
    %p65 = scmp.ne.s32.totalorder %s57, %s59
    %p66 = scmp.eq.s32.totalorder %s14, 1
    %p67 = por %p65, %p66
    %p68 = scmp.ne.s32.totalorder %s59, %s60
    %p69 = scmp.eq.s32.totalorder %s14, 0
    %p70 = por %p68, %p69
    %p71 = scmp.ne.s32.totalorder %s59, %s60
    %p72 = scmp.eq.s32.totalorder %s15, 1
    %p73 = por %p71, %p72
    %p75 = scmp.ne.s32.totalorder %s60, %s74
    %p76 = scmp.eq.s32.totalorder %s15, 0
    %p77 = por %p75, %p76
    %s79 = sadd.s32 %s78, 1
    %p82 = scmp.eq.s32.totalorder %s9, 1
    %p83 = scmp.ne.s32.totalorder %s78, %s80
    %p84 = scmp.eq.s32.totalorder %s9, 0
    %p85 = por %p83, %p84
    %p86 = scmp.ne.s32.totalorder %s78, %s80
    %p87 = scmp.eq.s32.totalorder %s14, 1
    %p88 = por %p86, %p87
    %p89 = scmp.ne.s32.totalorder %s80, %s81
    %p90 = scmp.eq.s32.totalorder %s14, 0
    %p91 = por %p89, %p90
    %p92 = scmp.ne.s32.totalorder %s80, %s81
    %p93 = scmp.eq.s32.totalorder %s15, 1
    %p94 = por %p92, %p93
    %p96 = scmp.ne.s32.totalorder %s81, %s95
    %p97 = scmp.eq.s32.totalorder %s15, 0
    %p98 = por %p96, %p97
    %s99 = ssub.s32 %s16, %s28
    %s100 = ssub.s32 %s17, %s24
    %s101 = sor.u32 %s99, %s100
    %p102 = scmp.eq.s32.totalorder %s101, 0
    %s104 = sadd.s32 %s103, 1
    %s105 = scalar_select %p102, %s103, %s104
    %p108 = pneg %p102
    %p109 = scmp.eq.s32.totalorder %s9, 1
    %p110 = por %p108, %p109
    %p111 = scmp.ne.s32.totalorder %s103, %s106
    %p112 = scmp.eq.s32.totalorder %s9, 0
    %p113 = por %p111, %p112
    %p114 = scmp.ne.s32.totalorder %s103, %s106
    %p115 = scmp.eq.s32.totalorder %s14, 1
    %p116 = por %p114, %p115
    %p117 = scmp.ne.s32.totalorder %s106, %s107
    %p118 = scmp.eq.s32.totalorder %s14, 0
    %p119 = por %p117, %p118
    %p120 = scmp.ne.s32.totalorder %s106, %s107
    %p121 = scmp.eq.s32.totalorder %s15, 1
    %p122 = por %p120, %p121
    %p124 = scmp.ne.s32.totalorder %s107, %s123
    %p125 = scmp.eq.s32.totalorder %s15, 0
    %p126 = por %p124, %p125
    %p127 = scmp.le.s32.totalorder 1, %s9
    %p128 = scmp.lt.s32.totalorder %s9, 3
    %p129 = pnand %p127, %p128
    %p130 = pneg %p129
    // Predicated region
    $region9: #{encoder_ss_forward.3} parent=5 // pred_check
      _
    $region10: #{encoder_ss_forward.3} parent=5 // pred_check_branch
      %132 = sbr.rel (%p129) target = $region12
    $region11: #{encoder_ss_forward.3} parent=5 // pred_region
      %s133 = ssub.s32 %s9, 1
      // Predicated region
      $region13: #{encoder_ss_forward.3} parent=11 // pred_check
        %p134 = pneg %p70
      $region14: #{encoder_ss_forward.3} parent=11 // pred_check_branch
        %136 = sbr.rel (%p134) target = $region16
      $region15: #{encoder_ss_forward.3} parent=11 // pred_region
        _
      $region16: #{encoder_ss_forward.3} parent=11 // pred_fallthru
        _
      // Predicated region
      $region17: #{encoder_ss_forward.3} parent=11 // pred_check
        %p137 = pneg %p91
      $region18: #{encoder_ss_forward.3} parent=11 // pred_check_branch
        %139 = sbr.rel (%p137) target = $region20
      $region19: #{encoder_ss_forward.3} parent=11 // pred_region
        _
      $region20: #{encoder_ss_forward.3} parent=11 // pred_fallthru
        _
    $region12: #{encoder_ss_forward.3} parent=5 // pred_fallthru
      _
    %p140 = scmp.lt.s32.totalorder %s9, 2
    // Predicated region
    $region21: #{encoder_ss_forward.3} parent=5 // pred_check
      %p141 = pneg %p140
    $region22: #{encoder_ss_forward.3} parent=5 // pred_check_branch
      %143 = sbr.rel (%p141) target = $region24
    $region23: #{encoder_ss_forward.3} parent=5 // pred_region
      // Predicated region
      $region25: #{encoder_ss_forward.3} parent=23 // pred_check
        %p144 = pneg %p43
      $region26: #{encoder_ss_forward.3} parent=23 // pred_check_branch
        %146 = sbr.rel (%p144) target = $region28
      $region27: #{encoder_ss_forward.3} parent=23 // pred_region
        %p147 = scmp.lt.s32.totalorder %s16, 1
        %s148 = scalar_select %p147, %s16, 1
        %p149 = scmp.lt.s32.totalorder %s17, 0
        %s150 = scalar_select %p149, %s17, 0
        %s151 = smul.addr %s148, 5
        %s152 = sadd.s32 %s150, %s151
        %s153 = smul.addr %s152, 4
        %s154 = scalar_lea.vmem %s0, %s153
      $region28: #{encoder_ss_forward.3} parent=23 // pred_fallthru
        _
    $region24: #{encoder_ss_forward.3} parent=5 // pred_fallthru
      _
    %p155 = scmp.le.s32.totalorder 1, %s9
    %p156 = scmp.lt.s32.totalorder %s9, 3
    %p157 = pnand %p155, %p156
    %p158 = pneg %p157
    // Predicated region
    $region29: #{encoder_ss_forward.3} parent=5 // pred_check
      _
    $region30: #{encoder_ss_forward.3} parent=5 // pred_check_branch
      %160 = sbr.rel (%p157) target = $region32
    $region31: #{encoder_ss_forward.3} parent=5 // pred_region
      %s161 = ssub.s32 %s9, 1
      %p162 = scmp.lt.s32.totalorder %s18, 1
      %s163 = scalar_select %p162, %s18, 1
      %p164 = scmp.lt.s32.totalorder %s19, 0
      %s165 = scalar_select %p164, %s19, 0
      %s166 = smul.addr %s163, 5
      %s167 = sadd.s32 %s165, %s166
      %s168 = smul.addr %s167, 4
      %s169 = scalar_lea.vmem %s0, %s168
      %p170 = pneg %p49
      %p171 = pneg %p46
      %p172 = pneg %p70
      %p173 = pneg %p67
      %p174 = pneg %p91
      %p175 = pneg %p88
      %p176 = pneg %p119
      %p177 = pneg %p116
      %p178 = scmp.lt.s32.totalorder %s18, 1
      %s179 = scalar_select %p178, %s18, 1
      %p180 = scmp.lt.s32.totalorder %s19, 0
      %s181 = scalar_select %p180, %s19, 0
      %s182 = sadd.s32 %s181, %s179
      %s183 = smul.addr %s182, 8
      %s184 = scalar_lea.vmem %s3, %s183
      %p185 = scmp.lt.s32.totalorder %s18, 1
      %s186 = scalar_select %p185, %s18, 1
      %p187 = scmp.lt.s32.totalorder %s19, 0
      %s188 = scalar_select %p187, %s19, 0
      %s189 = smul.addr %s186, 5
      %s190 = sadd.s32 %s188, %s189
      %s191 = smul.addr %s190, 4
      %s192 = scalar_lea.vmem %s0, %s191
      %p193 = scmp.lt.s32.totalorder %s18, 1
      %s194 = scalar_select %p193, %s18, 1
      %p195 = scmp.lt.s32.totalorder %s19, 0
      %s196 = scalar_select %p195, %s19, 0
      %s197 = sadd.s32 %s196, %s194
      %s198 = smul.addr %s197, 8
      %s199 = scalar_lea.vmem %s3, %s198
      %v201 = vld [vmem:[%s1] sm:$0xf]
      %v202 = vld [vmem:[%s1 + $0x4] sm:$0xf]
      %v203 = vld [vmem:[%s192] sm:$0xf]
      %v204 = vld [vmem:[%s192 + $0x4] sm:$0xf]
      %v205 = vld [vmem:[%s192 + $0x8] sm:$0xf]
      %v206 = vld [vmem:[%s192 + $0xc] sm:$0xf]
      %v207 = vld [vmem:[%s192 + $0x10] sm:$0x3]
      %v210 = vunpack.c.l.b16 %v201
      %v211 = vunpack.c.l.b16 %v202
      %v212 = vpack.c.b16 %v211, %v210
      %v218 = vunpack.c.l.b16 %v203
      %v219 = vunpack.c.l.b16 %v204
      %v220 = vunpack.c.l.b16 %v205
      %v221 = vunpack.c.l.b16 %v206
      %v222 = vunpack.c.l.b16 %v207
      %v223 = vpack.c.b16 %v219, %v218
      %v224 = vpack.c.b16 %v221, %v220
      %v225 = vpack.c.b16 %v222, %v222
      %vm228 = vcmask 293888
      %v230 = vsel %vm228, %v212, 0
      %vm232 = vcmask 1041408
      %v234 = vsel %vm232, %v225, 0
      %236 = vmatprep.subr.bf16.mxu0 0
      %237 = vmatpush1.bf16.msra.mxu0 %v223
      %238 = vmatprep.subr.bf16.mxu0 0
      %239 = vmatpush1.bf16.msra.mxu0 %v224
      %240 = vmatprep.subr.bf16.mxu0 0
      %241 = vmatpush1.bf16.msra.mxu0 %v234
      %242 = vmatprep.subr.bf16.mxu0 0
      %243 = vmatpush1.bf16.msra.mxu0 0
      %244 = vmatprep.subr.bf16.mxu0 0
      %245 = vmatpush1.bf16.msra.mxu0 0
      %246 = vmatprep.subr.bf16.mxu0 0
      %247 = vmatpush1.bf16.msra.mxu0 0
      %248 = vmatprep.subr.bf16.mxu0 0
      %249 = vmatpush1.bf16.msra.mxu0 0
      %250 = vmatprep.subr.bf16.mxu0 0
      %251 = vmatpush1.bf16.msra.mxu0 0
      %252 = vmatprep.subr.bf16.mxu0 0
      %253 = vmatpush1.bf16.msra.mxu0 0
      %254 = vmatprep.subr.bf16.mxu0 0
      %255 = vmatpush1.bf16.msra.mxu0 0
      %256 = vmatprep.subr.bf16.mxu0 0
      %257 = vmatpush1.bf16.msra.mxu0 0
      %258 = vmatprep.subr.bf16.mxu0 0
      %259 = vmatpush1.bf16.msra.mxu0 0
      %260 = vmatprep.subr.bf16.mxu0 0
      %261 = vmatpush1.bf16.msra.mxu0 0
      %262 = vmatprep.subr.bf16.mxu0 0
      %263 = vmatpush1.bf16.msra.mxu0 0
      %264 = vmatprep.subr.bf16.mxu0 0
      %265 = vmatpush1.bf16.msra.mxu0 0
      %266 = vmatprep.subr.bf16.mxu0 0
      %267 = vmatpush1.bf16.msra.mxu0 0
      %268 = vmatprep.mubr.bf16.mxu0 0
      %269 = vmatmul.mubr.bf16.gmra.mrb[0].mxu0 %v230
      %v270 = vpop.f32.mrb[0].mxu0
      %v271 = vadd.f32 0.0, %v270
      %v272 = vpop.f32.mrb[0].mxu0
      %v273 = vpop.f32.mrb[0].mxu0
      %v274 = vadd.f32 0.0, %v273
      %v275 = vpop.f32.mrb[0].mxu0
      %276 = vdwg.mxu0
      %v277 = vld [vmem:[%s2] sm:$0xff]
      %v278 = vld [vmem:[%s2 + $0x8] sm:$0xff]
      %280 = vset.pattern.permute.xlu0 0
      %281 = vperm.xlu0 %280, %v277
      %v282 = vpop.permute.xlu0 %281
      %285 = vset.pattern.permute.xlu0 0
      %286 = vperm.xlu0 %285, %v278
      %v287 = vpop.permute.xlu0 %286
      %v289 = vmul.f32 %v271, %v282
      %v290 = vmul.f32 %v274, %v287
      %291 = vset.pattern.permute.xlu0 1
      %292 = vperm.xlu0 %291, %v277
      %v293 = vpop.permute.xlu0 %292
      %295 = vset.pattern.permute.xlu0 1
      %296 = vperm.xlu0 %295, %v278
      %v297 = vpop.permute.xlu0 %296
      %v299 = vadd.f32 %v289, %v293
      %v300 = vadd.f32 %v290, %v297
      %v301 = vadd.f32 %v299, %v300
      %vm302 = vcmask 523264
      %303 = vst.msk [vmem:[%s199] sm:$0xff] %vm302, %v301
      %p304 = scmp.lt.s32.totalorder %s18, 1
      %s305 = scalar_select %p304, %s18, 1
      %p306 = scmp.lt.s32.totalorder %s19, 0
      %s307 = scalar_select %p306, %s19, 0
      %s308 = sadd.s32 %s307, %s305
      %s309 = smul.addr %s308, 8
      %s310 = scalar_lea.vmem %s3, %s309
      // Predicated region
      $region33: #{encoder_ss_forward.3} parent=31 // pred_check
        %p311 = pneg %p116
      $region34: #{encoder_ss_forward.3} parent=31 // pred_check_branch
        %313 = sbr.rel (%p311) target = $region36
      $region35: #{encoder_ss_forward.3} parent=31 // pred_region
        _
      $region36: #{encoder_ss_forward.3} parent=31 // pred_fallthru
        _
    $region32: #{encoder_ss_forward.3} parent=5 // pred_fallthru
      _
    %p314 = scmp.le.s32.totalorder 2, %s9
    // Predicated region
    $region37: #{encoder_ss_forward.3} parent=5 // pred_check
      %p315 = pneg %p314
    $region38: #{encoder_ss_forward.3} parent=5 // pred_check_branch
      %317 = sbr.rel (%p315) target = $region40
    $region39: #{encoder_ss_forward.3} parent=5 // pred_region
      %s318 = ssub.s32 %s9, 2
      // Predicated region
      $region41: #{encoder_ss_forward.3} parent=39 // pred_check
        %p319 = pneg %p122
      $region42: #{encoder_ss_forward.3} parent=39 // pred_check_branch
        %321 = sbr.rel (%p319) target = $region44
      $region43: #{encoder_ss_forward.3} parent=39 // pred_region
        %p322 = scmp.lt.s32.totalorder %s20, 1
        %s323 = scalar_select %p322, %s20, 1
        %p324 = scmp.lt.s32.totalorder %s21, 0
        %s325 = scalar_select %p324, %s21, 0
        %s326 = sadd.s32 %s325, %s323
        %s327 = smul.addr %s326, 8
        %s328 = scalar_lea.vmem %s3, %s327
      $region44: #{encoder_ss_forward.3} parent=39 // pred_fallthru
        _
    $region40: #{encoder_ss_forward.3} parent=5 // pred_fallthru
      _
  $region6: #{encoder_ss_forward.3} parent=0 // loop_footer
    %s13 = sadd.s32 1, %s9
  $region7: #{encoder_ss_forward.3} parent=0 // loop_footer_branch
    %8 = sbr.rel target = $region3
  $region8: #{encoder_ss_forward.3} parent=0 // loop_exit
    _

// kernel: encoder_ss_forward.2
$region0: #{encoder_ss_forward.2}
  #allocation0 [shape = 'u32[]', space=smem, size = 0x4, offset = 0x4, fixed_abs, tag = 'smem constant byte address 0x4 - core index']
  #allocation1 [shape = 'u32[144,128]{1,0:T(1,128)}', space=vmem, size = 0x12000, scoped, tag = 'internal scratch']
  %s0 = inlined_call_operand.vmem [shape: bf16[2,36,64], index: 0, kind: input, shape index: {}]
  %s1 = inlined_call_operand.vmem [shape: bf16[16,36], index: 1, kind: input, shape index: {}]
  %s2 = inlined_call_operand.vmem [shape: f32[2,1,16,2], index: 2, kind: output, shape index: {}]
  %s3 = sld [smem:[#allocation0]]
  $region41: #{encoder_ss_forward.2} parent=0
    _
  %s5 = ssub.s32 1, %s3
  %s6 = scalar_select 0, %s5, %s3
  loop: start=0, step=1, limit=4
  $region2: #{encoder_ss_forward.2} parent=0 // loop_pre_header
    _
  $region3: #{encoder_ss_forward.2} parent=0 // loop_header
    %s8 = sphi 0, %s12
    %p9 = scmp.ge.s32.totalorder %s8, 4
    %s15 = sphi 0, %s27
    %s16 = sphi 0, %s23
    %s17 = sphi 0, %s15
    %s18 = sphi 0, %s16
    %s19 = sphi 0, %s17
    %s20 = sphi 0, %s18
    %s32 = sphi 0, %s34
    %s35 = sphi 0, %s32
    %s36 = sphi 0, %s35
    %s52 = sphi 0, %s36
    %s56 = sphi 0, %s56
    %s58 = sphi 0, %s56
    %s59 = sphi 0, %s58
    %s73 = sphi 0, %s59
    %s81 = sphi 0, %s83
    %s84 = sphi 0, %s81
    %s85 = sphi 0, %s84
    %s101 = sphi 0, %s85
  $region4: #{encoder_ss_forward.2} parent=0 // loop_header_branch
    %11 = sbr.rel (%p9) target = $region8
  $region5: #{encoder_ss_forward.2} parent=0 // loop_body
    %s13 = ssub.s32 %s8, 1
    %s14 = ssub.s32 %s8, 2
    %s21 = sadd.s32 1, %s16
    %p22 = scmp.ge.s32.totalorder %s21, 1
    %s23 = scalar_select %p22, 0, %s21
    %s24 = sadd.s32 1, %s15
    %s25 = scalar_select %p22, %s24, %s15
    %p26 = scmp.ge.s32.totalorder %s25, 2
    %s27 = scalar_select %p26, 0, %s25
    %s28 = ssub.s32 %s15, %s27
    %s29 = ssub.s32 %s16, %s23
    %s30 = sor.u32 %s28, %s29
    %p31 = scmp.eq.s32.totalorder %s30, 0
    %s33 = sadd.s32 %s32, 1
    %s34 = scalar_select %p31, %s32, %s33
    %p37 = pneg %p31
    %p38 = scmp.eq.s32.totalorder %s8, 1
    %p39 = por %p37, %p38
    %p40 = scmp.ne.s32.totalorder %s32, %s35
    %p41 = scmp.eq.s32.totalorder %s8, 0
    %p42 = por %p40, %p41
    %p43 = scmp.ne.s32.totalorder %s32, %s35
    %p44 = scmp.eq.s32.totalorder %s13, 1
    %p45 = por %p43, %p44
    %p46 = scmp.ne.s32.totalorder %s35, %s36
    %p47 = scmp.eq.s32.totalorder %s13, 0
    %p48 = por %p46, %p47
    %p49 = scmp.ne.s32.totalorder %s35, %s36
    %p50 = scmp.eq.s32.totalorder %s14, 1
    %p51 = por %p49, %p50
    %p53 = scmp.ne.s32.totalorder %s36, %s52
    %p54 = scmp.eq.s32.totalorder %s14, 0
    %p55 = por %p53, %p54
    %s57 = sadd.s32 %s56, 1
    %p60 = scmp.eq.s32.totalorder %s8, 1
    %p61 = scmp.ne.s32.totalorder %s56, %s58
    %p62 = scmp.eq.s32.totalorder %s8, 0
    %p63 = por %p61, %p62
    %p64 = scmp.ne.s32.totalorder %s56, %s58
    %p65 = scmp.eq.s32.totalorder %s13, 1
    %p66 = por %p64, %p65
    %p67 = scmp.ne.s32.totalorder %s58, %s59
    %p68 = scmp.eq.s32.totalorder %s13, 0
    %p69 = por %p67, %p68
    %p70 = scmp.ne.s32.totalorder %s58, %s59
    %p71 = scmp.eq.s32.totalorder %s14, 1
    %p72 = por %p70, %p71
    %p74 = scmp.ne.s32.totalorder %s59, %s73
    %p75 = scmp.eq.s32.totalorder %s14, 0
    %p76 = por %p74, %p75
    %s77 = ssub.s32 %s15, %s27
    %s78 = ssub.s32 %s16, %s23
    %s79 = sor.u32 %s77, %s78
    %p80 = scmp.eq.s32.totalorder %s79, 0
    %s82 = sadd.s32 %s81, 1
    %s83 = scalar_select %p80, %s81, %s82
    %p86 = pneg %p80
    %p87 = scmp.eq.s32.totalorder %s8, 1
    %p88 = por %p86, %p87
    %p89 = scmp.ne.s32.totalorder %s81, %s84
    %p90 = scmp.eq.s32.totalorder %s8, 0
    %p91 = por %p89, %p90
    %p92 = scmp.ne.s32.totalorder %s81, %s84
    %p93 = scmp.eq.s32.totalorder %s13, 1
    %p94 = por %p92, %p93
    %p95 = scmp.ne.s32.totalorder %s84, %s85
    %p96 = scmp.eq.s32.totalorder %s13, 0
    %p97 = por %p95, %p96
    %p98 = scmp.ne.s32.totalorder %s84, %s85
    %p99 = scmp.eq.s32.totalorder %s14, 1
    %p100 = por %p98, %p99
    %p102 = scmp.ne.s32.totalorder %s85, %s101
    %p103 = scmp.eq.s32.totalorder %s14, 0
    %p104 = por %p102, %p103
    %p105 = scmp.le.s32.totalorder 1, %s8
    %p106 = scmp.lt.s32.totalorder %s8, 3
    %p107 = pnand %p105, %p106
    %p108 = pneg %p107
    // Predicated region
    $region9: #{encoder_ss_forward.2} parent=5 // pred_check
      _
    $region10: #{encoder_ss_forward.2} parent=5 // pred_check_branch
      %110 = sbr.rel (%p107) target = $region12
    $region11: #{encoder_ss_forward.2} parent=5 // pred_region
      %s111 = ssub.s32 %s8, 1
      // Predicated region
      $region13: #{encoder_ss_forward.2} parent=11 // pred_check
        %p112 = pneg %p69
      $region14: #{encoder_ss_forward.2} parent=11 // pred_check_branch
        %114 = sbr.rel (%p112) target = $region16
      $region15: #{encoder_ss_forward.2} parent=11 // pred_region
        _
      $region16: #{encoder_ss_forward.2} parent=11 // pred_fallthru
        _
    $region12: #{encoder_ss_forward.2} parent=5 // pred_fallthru
      _
    %p115 = scmp.lt.s32.totalorder %s8, 2
    // Predicated region
    $region17: #{encoder_ss_forward.2} parent=5 // pred_check
      %p116 = pneg %p115
    $region18: #{encoder_ss_forward.2} parent=5 // pred_check_branch
      %118 = sbr.rel (%p116) target = $region20
    $region19: #{encoder_ss_forward.2} parent=5 // pred_region
      // Predicated region
      $region21: #{encoder_ss_forward.2} parent=19 // pred_check
        %p119 = pneg %p42
      $region22: #{encoder_ss_forward.2} parent=19 // pred_check_branch
        %121 = sbr.rel (%p119) target = $region24
      $region23: #{encoder_ss_forward.2} parent=19 // pred_region
        %p122 = scmp.lt.s32.totalorder %s15, 1
        %s123 = scalar_select %p122, %s15, 1
        %p124 = scmp.lt.s32.totalorder %s16, 0
        %s125 = scalar_select %p124, %s16, 0
        %s126 = smul.addr %s123, 5
        %s127 = sadd.s32 %s125, %s126
        %s128 = smul.addr %s127, 4
        %s129 = scalar_lea.vmem %s0, %s128
      $region24: #{encoder_ss_forward.2} parent=19 // pred_fallthru
        _
    $region20: #{encoder_ss_forward.2} parent=5 // pred_fallthru
      _
    %p130 = scmp.le.s32.totalorder 1, %s8
    %p131 = scmp.lt.s32.totalorder %s8, 3
    %p132 = pnand %p130, %p131
    %p133 = pneg %p132
    // Predicated region
    $region25: #{encoder_ss_forward.2} parent=5 // pred_check
      _
    $region26: #{encoder_ss_forward.2} parent=5 // pred_check_branch
      %135 = sbr.rel (%p132) target = $region28
    $region27: #{encoder_ss_forward.2} parent=5 // pred_region
      %s136 = ssub.s32 %s8, 1
      %p137 = scmp.lt.s32.totalorder %s17, 1
      %s138 = scalar_select %p137, %s17, 1
      %p139 = scmp.lt.s32.totalorder %s18, 0
      %s140 = scalar_select %p139, %s18, 0
      %s141 = smul.addr %s138, 5
      %s142 = sadd.s32 %s140, %s141
      %s143 = smul.addr %s142, 4
      %s144 = scalar_lea.vmem %s0, %s143
      %p145 = pneg %p48
      %p146 = pneg %p45
      %p147 = pneg %p69
      %p148 = pneg %p66
      %p149 = pneg %p97
      %p150 = pneg %p94
      %p151 = scmp.lt.s32.totalorder %s17, 1
      %s152 = scalar_select %p151, %s17, 1
      %p153 = scmp.lt.s32.totalorder %s18, 0
      %s154 = scalar_select %p153, %s18, 0
      %s155 = smul.addr %s154, 2
      %s156 = smul.addr %s152, 2
      %s157 = sadd.s32 %s155, %s156
      %s158 = smul.addr %s157, 8
      %s159 = scalar_lea.vmem %s2, %s158
      %p160 = scmp.lt.s32.totalorder %s17, 1
      %s161 = scalar_select %p160, %s17, 1
      %p162 = scmp.lt.s32.totalorder %s18, 0
      %s163 = scalar_select %p162, %s18, 0
      %s164 = smul.addr %s161, 5
      %s165 = sadd.s32 %s163, %s164
      %s166 = smul.addr %s165, 4
      %s167 = scalar_lea.vmem %s0, %s166
      %p168 = scmp.lt.s32.totalorder %s17, 1
      %s169 = scalar_select %p168, %s17, 1
      %p170 = scmp.lt.s32.totalorder %s18, 0
      %s171 = scalar_select %p170, %s18, 0
      %s172 = smul.addr %s171, 2
      %s173 = smul.addr %s169, 2
      %s174 = sadd.s32 %s172, %s173
      %s175 = smul.addr %s174, 8
      %s176 = scalar_lea.vmem %s2, %s175
      %v178 = vld [vmem:[%s1] sm:$0xf]
      %v179 = vld [vmem:[%s1 + $0x4] sm:$0xf]
      %v180 = vld [vmem:[%s167] sm:$0xf]
      %v181 = vld [vmem:[%s167 + $0x4] sm:$0xf]
      %v182 = vld [vmem:[%s167 + $0x8] sm:$0xf]
      %v183 = vld [vmem:[%s167 + $0xc] sm:$0xf]
      %v184 = vld [vmem:[%s167 + $0x10] sm:$0x3]
      %v187 = vunpack.c.l.b16 %v178
      %v188 = vunpack.c.l.b16 %v179
      %v189 = vpack.c.b16 %v188, %v187
      %v195 = vunpack.c.l.b16 %v180
      %v196 = vunpack.c.l.b16 %v181
      %v197 = vunpack.c.l.b16 %v182
      %v198 = vunpack.c.l.b16 %v183
      %v199 = vunpack.c.l.b16 %v184
      %v200 = vpack.c.b16 %v196, %v195
      %v201 = vpack.c.b16 %v198, %v197
      %v202 = vpack.c.b16 %v199, %v199
      %vm205 = vcmask 293888
      %v207 = vsel %vm205, %v189, 0
      %vm209 = vcmask 1041408
      %v211 = vsel %vm209, %v202, 0
      %213 = vmatprep.subr.bf16.mxu0 0
      %214 = vmatpush1.bf16.msra.mxu0 %v200
      %215 = vmatprep.subr.bf16.mxu0 0
      %216 = vmatpush1.bf16.msra.mxu0 %v201
      %217 = vmatprep.subr.bf16.mxu0 0
      %218 = vmatpush1.bf16.msra.mxu0 %v211
      %219 = vmatprep.subr.bf16.mxu0 0
      %220 = vmatpush1.bf16.msra.mxu0 0
      %221 = vmatprep.subr.bf16.mxu0 0
      %222 = vmatpush1.bf16.msra.mxu0 0
      %223 = vmatprep.subr.bf16.mxu0 0
      %224 = vmatpush1.bf16.msra.mxu0 0
      %225 = vmatprep.subr.bf16.mxu0 0
      %226 = vmatpush1.bf16.msra.mxu0 0
      %227 = vmatprep.subr.bf16.mxu0 0
      %228 = vmatpush1.bf16.msra.mxu0 0
      %229 = vmatprep.subr.bf16.mxu0 0
      %230 = vmatpush1.bf16.msra.mxu0 0
      %231 = vmatprep.subr.bf16.mxu0 0
      %232 = vmatpush1.bf16.msra.mxu0 0
      %233 = vmatprep.subr.bf16.mxu0 0
      %234 = vmatpush1.bf16.msra.mxu0 0
      %235 = vmatprep.subr.bf16.mxu0 0
      %236 = vmatpush1.bf16.msra.mxu0 0
      %237 = vmatprep.subr.bf16.mxu0 0
      %238 = vmatpush1.bf16.msra.mxu0 0
      %239 = vmatprep.subr.bf16.mxu0 0
      %240 = vmatpush1.bf16.msra.mxu0 0
      %241 = vmatprep.subr.bf16.mxu0 0
      %242 = vmatpush1.bf16.msra.mxu0 0
      %243 = vmatprep.subr.bf16.mxu0 0
      %244 = vmatpush1.bf16.msra.mxu0 0
      %245 = vmatprep.mubr.bf16.mxu0 0
      %246 = vmatmul.mubr.bf16.gmra.mrb[0].mxu0 %v207
      %v247 = vpop.f32.mrb[0].mxu0
      %v248 = vadd.f32 0.0, %v247
      %v249 = vpop.f32.mrb[0].mxu0
      %v250 = vpop.f32.mrb[0].mxu0
      %v251 = vadd.f32 0.0, %v250
      %v252 = vpop.f32.mrb[0].mxu0
      %253 = vdwg.mxu0
      %vm254 = vcmask 523264
      %v255 = vsel %vm254, %v248, 0.0
      %256 = vadd.xlane.f32.xlu0 %v255
      %v257 = vpop.xlane.xlu0 %256
      %v258 = vsel %vm254, %v251, 0.0
      %259 = vadd.xlane.f32.xlu0 %v258
      %v260 = vpop.xlane.xlu0 %259
      %v261 = vmul.f32 %v248, %v248
      %v262 = vmul.f32 %v251, %v251
      %v263 = vsel %vm254, %v261, 0.0
      %264 = vadd.xlane.f32.xlu0 %v263
      %v265 = vpop.xlane.xlu0 %264
      %v266 = vsel %vm254, %v262, 0.0
      %267 = vadd.xlane.f32.xlu0 %v266
      %v268 = vpop.xlane.xlu0 %267
      %vm269 = vcmask 7168
      %v270 = vsel %vm269, %v257, %v265
      %v271 = vsel %vm269, %v260, %v268
      %vm272 = vcmask 15360
      %273 = vst.msk [vmem:[%s176] sm:$0xff] %vm272, %v270
      %274 = vst.msk [vmem:[%s176 + $0x8] sm:$0xff] %vm272, %v271
      %p275 = scmp.lt.s32.totalorder %s17, 1
      %s276 = scalar_select %p275, %s17, 1
      %p277 = scmp.lt.s32.totalorder %s18, 0
      %s278 = scalar_select %p277, %s18, 0
      %s279 = smul.addr %s278, 2
      %s280 = smul.addr %s276, 2
      %s281 = sadd.s32 %s279, %s280
      %s282 = smul.addr %s281, 8
      %s283 = scalar_lea.vmem %s2, %s282
      // Predicated region
      $region29: #{encoder_ss_forward.2} parent=27 // pred_check
        %p284 = pneg %p94
      $region30: #{encoder_ss_forward.2} parent=27 // pred_check_branch
        %286 = sbr.rel (%p284) target = $region32
      $region31: #{encoder_ss_forward.2} parent=27 // pred_region
        _
      $region32: #{encoder_ss_forward.2} parent=27 // pred_fallthru
        _
    $region28: #{encoder_ss_forward.2} parent=5 // pred_fallthru
      _
    %p287 = scmp.le.s32.totalorder 2, %s8
    // Predicated region
    $region33: #{encoder_ss_forward.2} parent=5 // pred_check
      %p288 = pneg %p287
    $region34: #{encoder_ss_forward.2} parent=5 // pred_check_branch
      %290 = sbr.rel (%p288) target = $region36
    $region35: #{encoder_ss_forward.2} parent=5 // pred_region
      %s291 = ssub.s32 %s8, 2
      // Predicated region
      $region37: #{encoder_ss_forward.2} parent=35 // pred_check
        %p292 = pneg %p100
      $region38: #{encoder_ss_forward.2} parent=35 // pred_check_branch
        %294 = sbr.rel (%p292) target = $region40
      $region39: #{encoder_ss_forward.2} parent=35 // pred_region
        %p295 = scmp.lt.s32.totalorder %s19, 1
        %s296 = scalar_select %p295, %s19, 1
        %p297 = scmp.lt.s32.totalorder %s20, 0
        %s298 = scalar_select %p297, %s20, 0
        %s299 = smul.addr %s298, 2
        %s300 = smul.addr %s296, 2
        %s301 = sadd.s32 %s299, %s300
        %s302 = smul.addr %s301, 8
        %s303 = scalar_lea.vmem %s2, %s302
      $region40: #{encoder_ss_forward.2} parent=35 // pred_fallthru
        _
    $region36: #{encoder_ss_forward.2} parent=5 // pred_fallthru
      _
  $region6: #{encoder_ss_forward.2} parent=0 // loop_footer
    %s12 = sadd.s32 1, %s8
  $region7: #{encoder_ss_forward.2} parent=0 // loop_footer_branch
    %7 = sbr.rel target = $region3
  $region8: #{encoder_ss_forward.2} parent=0 // loop_exit
    _

</llo_original>
